<compile_context>
chip_gen: v6e
topology: v6e:2x2x1
jax: 0.10.0
libtpu: 0.0.40
codegen_flags: <defaults>
</compile_context>

<pallas_src>
import jax
import jax.numpy as jnp
from jax.experimental import pallas as pl
from jax.experimental.pallas import tpu as pltpu


def _round_up(n, m):
    return ((n + m - 1) // m) * m


def linear_kernel(w_ref, b_ref, xt_ref, o_ref):
    # w_ref: (3,) f32 in SMEM, b_ref: (1,) f32 in SMEM
    # xt_ref: (3, TB) f32 in VMEM (features on sublanes, batch on lanes)
    # o_ref:  (1, TB) f32 in VMEM (lane-dense output)
    x = xt_ref[...]                                   # (3, TB)
    y = (x[0:1, :] * w_ref[0]
         + x[1:2, :] * w_ref[1]
         + x[2:3, :] * w_ref[2]
         + b_ref[0])                                  # (1, TB), pure VPU work
    o_ref[...] = y


def multivariable_linear_regression(x, weight, bias, *, tile_b=1024):
    """x: (B, 3) f32, weight: (1, 3) f32 (PyTorch layout), bias: (1,) f32."""
    B, in_features = x.shape
    out_features = weight.shape[0]
    assert in_features == 3 and out_features == 1

    # Layout plumbing (plain JAX, outside the kernel): batch -> lane axis.
    xt = x.astype(jnp.float32).T                      # (3, B)

    # Lane tile: multiple of 128; don't over-pad tiny batches.
    tb = min(_round_up(tile_b, 128), _round_up(B, 128))
    b_pad = _round_up(B, tb)
    if b_pad != B:
        xt = jnp.pad(xt, ((0, 0), (0, b_pad - B)))    # zero-pad; sliced off below

    grid = (pl.cdiv(b_pad, tb),)

    w_flat = weight.reshape(in_features).astype(jnp.float32)   # (3,)  SMEM scalars
    b_flat = bias.reshape(out_features).astype(jnp.float32)    # (1,)  SMEM scalar

    y_t = pl.pallas_call(
        linear_kernel,
        out_shape=jax.ShapeDtypeStruct((1, b_pad), jnp.float32),
        grid=grid,
        in_specs=[
            pl.BlockSpec(memory_space=pltpu.MemorySpace.SMEM),   # weight scalars
            pl.BlockSpec(memory_space=pltpu.MemorySpace.SMEM),   # bias scalar
            pl.BlockSpec((in_features, tb), lambda i: (0, i)),   # x^T batch tile
        ],
        out_specs=pl.BlockSpec((1, tb), lambda i: (0, i)),       # lane-dense output
        compiler_params=pltpu.CompilerParams(
            dimension_semantics=("parallel",)),
    )(w_flat, b_flat, xt)

    # Back to PyTorch output layout (B, 1); drop batch padding.
    return y_t[0, :B].reshape(B, out_features)


if __name__ == "__main__":
    key = jax.random.PRNGKey(0)
    kx, kw, kb = jax.random.split(key, 3)

    batch, in_features, out_features = 8, 3, 1

    # Deterministic parameter init (mimics nn.Linear uniform(-1/sqrt(3), 1/sqrt(3))).
    bound = 1.0 / jnp.sqrt(jnp.float32(in_features))
    weight = jax.random.uniform(kw, (out_features, in_features),
                                minval=-bound, maxval=bound, dtype=jnp.float32)
    bias = jax.random.uniform(kb, (out_features,),
                              minval=-bound, maxval=bound, dtype=jnp.float32)

    x = jax.random.normal(kx, (batch, in_features), dtype=jnp.float32)

    y = multivariable_linear_regression(x, weight, bias)
    jax.block_until_ready(y)

    # Correctness check vs. plain JAX reference of the PyTorch forward.
    y_ref = x @ weight.T + bias
    assert y.shape == (batch, out_features)
    assert jnp.allclose(y, y_ref, atol=1e-5, rtol=1e-5)

    print("KERNEL_OK")
</pallas_src>

<mosaic_0001>
module attributes {stable_mosaic.version = 11 : i64} {
  func.func @linear_kernel(%arg0: i32, %arg1: memref<3xf32, #tpu.memory_space<smem>>, %arg2: memref<1xf32, #tpu.memory_space<smem>>, %arg3: memref<3x128xf32, #tpu.memory_space<vmem>>, %arg4: memref<1x128xf32, #tpu.memory_space<vmem>>) attributes {dimension_semantics = [#tpu.dimension_semantics<parallel>], iteration_bounds = array<i64: 1>, scalar_prefetch = 0 : i64, scratch_operands = 0 : i64, tpu.core_type = #tpu.core_type<tc>, window_params = [{transform_indices = @transform_0, window_bounds = array<i64: 3>}, {transform_indices = @transform_1, window_bounds = array<i64: 1>}, {transform_indices = @transform_2, window_bounds = array<i64: 3, 128>}, {transform_indices = @transform_3, window_bounds = array<i64: 1, 128>}]} {
    %c0 = arith.constant 0 : index
    %c0_0 = arith.constant 0 : index
    %0 = vector.load %arg3[%c0, %c0_0] : memref<3x128xf32, #tpu.memory_space<vmem>>, vector<3x128xf32>
    %1 = vector.extract_strided_slice %0 {offsets = [0, 0], sizes = [1, 128], strides = [1, 1]} : vector<3x128xf32> to vector<1x128xf32>
    %c0_1 = arith.constant 0 : index
    %2 = memref.load %arg1[%c0_1] : memref<3xf32, #tpu.memory_space<smem>>
    %3 = vector.broadcast %2 : f32 to vector<1x128xf32>
    %4 = arith.mulf %1, %3 : vector<1x128xf32>
    %5 = vector.extract_strided_slice %0 {offsets = [1, 0], sizes = [1, 128], strides = [1, 1]} : vector<3x128xf32> to vector<1x128xf32>
    %c1 = arith.constant 1 : index
    %6 = memref.load %arg1[%c1] : memref<3xf32, #tpu.memory_space<smem>>
    %7 = vector.broadcast %6 : f32 to vector<1x128xf32>
    %8 = arith.mulf %5, %7 : vector<1x128xf32>
    %9 = arith.addf %4, %8 : vector<1x128xf32>
    %10 = vector.extract_strided_slice %0 {offsets = [2, 0], sizes = [1, 128], strides = [1, 1]} : vector<3x128xf32> to vector<1x128xf32>
    %c2 = arith.constant 2 : index
    %11 = memref.load %arg1[%c2] : memref<3xf32, #tpu.memory_space<smem>>
    %12 = vector.broadcast %11 : f32 to vector<1x128xf32>
    %13 = arith.mulf %10, %12 : vector<1x128xf32>
    %14 = arith.addf %9, %13 : vector<1x128xf32>
    %c0_2 = arith.constant 0 : index
    %15 = memref.load %arg2[%c0_2] : memref<1xf32, #tpu.memory_space<smem>>
    %16 = vector.broadcast %15 : f32 to vector<1x128xf32>
    %17 = arith.addf %14, %16 : vector<1x128xf32>
    %c0_3 = arith.constant 0 : index
    %c0_4 = arith.constant 0 : index
    %18 = vector.load %arg4[%c0_3, %c0_4] : memref<1x128xf32, #tpu.memory_space<vmem>>, vector<1x128xf32>
    tpu.vector_store %arg4[%c0_3, %c0_4], %17 {strides = array<i32>} : memref<1x128xf32, #tpu.memory_space<vmem>>, vector<1x128xf32>,
    return
  }
  func.func @transform_0(%arg0: i32) -> i32 {
    %c0_i32 = arith.constant 0 : i32
    %c0_i32_0 = arith.constant 0 : i32
    return %c0_i32 : i32
  }
  func.func @transform_1(%arg0: i32) -> i32 {
    %c0_i32 = arith.constant 0 : i32
    %c0_i32_0 = arith.constant 0 : i32
    return %c0_i32 : i32
  }
  func.func @transform_2(%arg0: i32) -> (i32, i32) {
    %c0_i32 = arith.constant 0 : i32
    %c0_i32_0 = arith.constant 0 : i32
    return %c0_i32, %arg0 : i32, i32
  }
  func.func @transform_3(%arg0: i32) -> (i32, i32) {
    %c0_i32 = arith.constant 0 : i32
    %c0_i32_0 = arith.constant 0 : i32
    return %c0_i32, %arg0 : i32, i32
  }
}

</mosaic_0001>

<llo_original>
// kernel: tpu_custom_call.1
$region0: #{tpu_custom_call.1}
  #allocation0 [shape = 'u32[]', space=smem, size = 0x4, offset = 0x4, fixed_abs, tag = 'smem constant byte address 0x4 - core index']
  #allocation1 [shape = 'u32[144,128]{1,0:T(1,128)}', space=vmem, size = 0x12000, scoped, tag = 'internal scratch']
  #allocation2 [shape = 'f32[1]{0:T(128)S(6)}', space=smem, size = 0x200, scoped, tag = 'scoped memory for tpu_custom_call.1']
  %s0 = inlined_call_operand.vmem [shape: f32[3], index: 0, kind: input, shape index: {}]
  %s1 = inlined_call_operand.<no memory space> [shape: f32[1], index: 1, kind: input, shape index: {}]
  %s2 = inlined_call_operand.hbm [shape: f32[3,128], index: 2, kind: input, shape index: {}]
  %s3 = inlined_call_operand.hbm [shape: f32[1,128], index: 3, kind: output, shape index: {}]
  %s4 = sld [smem:[#allocation0]]
  $region30: #{tpu_custom_call.1} parent=0
    _
  %s6 = ssub.s32 1, %s4
  %s7 = scalar_select 0, %s6, %s4
  %8 = sst [smem:[#allocation2]] %s1
  $region1: #{tpu_custom_call.1} parent=0
    #allocation3 [shape = 'u8[512]{0}', space=smem, size = 0x200, scoped, tag = 'input window, operand 0, single buffered']
    #allocation4 [shape = 's32[1]{0}', space=sflag, size = 0x4, scoped, tag = 'scoped memory for tpu_custom_call.1']
    #allocation5 [shape = 's32[1]{0}', space=sflag, size = 0x4, scoped, tag = 'scoped memory for tpu_custom_call.1']
    #allocation6 [shape = 's32[1]{0}', space=sflag, size = 0x4, scoped, tag = 'scoped memory for tpu_custom_call.1']
    #allocation7 [shape = 'u8[2048]{0}', space=vmem, size = 0x800, scoped, tag = 'input window, operand 2, single buffered']
    #allocation8 [shape = 'u8[512]{0}', space=vmem, size = 0x400, scoped, tag = 'output window, operand 0, single buffered']
    %9 = vsyncpa [#allocation6], 0
    %10 = vsyncpa [#allocation4], 0
    %11 = vsyncpa [#allocation5], 0
    // Predicated region
    $region2: #{tpu_custom_call.1} parent=1 // pred_check
      _
    $region3: #{tpu_custom_call.1} parent=1 // pred_check_branch
      %13 = sbr.rel (0) target = $region5
    $region4: #{tpu_custom_call.1} parent=1 // pred_region
      %s15 = ssub.s32 16, 16
      %16 = vsyncadd [#allocation6], %s15
      %s18 = sshll.u32 %s0, 4
      %s19 = int_to_ptr.vmem [resolvable:$true] %s18
      %21 = dma.vmem_to_smem %s19, 16, [#allocation3], [#allocation6]
    $region5: #{tpu_custom_call.1} parent=1 // pred_fallthru
      _
    // Predicated region
    $region6: #{tpu_custom_call.1} parent=1 // pred_check
      _
    $region7: #{tpu_custom_call.1} parent=1 // pred_check_branch
      %23 = sbr.rel (0) target = $region9
    $region8: #{tpu_custom_call.1} parent=1 // pred_region
      _
    $region9: #{tpu_custom_call.1} parent=1 // pred_fallthru
      _
    // Predicated region
    $region10: #{tpu_custom_call.1} parent=1 // pred_check
      _
    $region11: #{tpu_custom_call.1} parent=1 // pred_check_branch
      %25 = sbr.rel (0) target = $region13
    $region12: #{tpu_custom_call.1} parent=1 // pred_region
      %s27 = ssub.s32 64, 64
      %28 = vsyncadd [#allocation4], %s27
      %s30 = sshll.u32 [#allocation7], 4
      %s31 = int_to_ptr.vmem [resolvable:$true] %s30
      %33 = dma.hbm_to_vmem [thread:$0]  %s2, 64, %s31, [#allocation4]
    $region13: #{tpu_custom_call.1} parent=1 // pred_fallthru
      _
    // Predicated region
    $region14: #{tpu_custom_call.1} parent=1 // pred_check
      _
    $region15: #{tpu_custom_call.1} parent=1 // pred_check_branch
      %35 = sbr.rel (0) target = $region17
    $region16: #{tpu_custom_call.1} parent=1 // pred_region
      %36 = dma.done [#allocation6], 16
    $region17: #{tpu_custom_call.1} parent=1 // pred_fallthru
      _
    // Predicated region
    $region18: #{tpu_custom_call.1} parent=1 // pred_check
      _
    $region19: #{tpu_custom_call.1} parent=1 // pred_check_branch
      %38 = sbr.rel (0) target = $region21
    $region20: #{tpu_custom_call.1} parent=1 // pred_region
      %39 = dma.done [#allocation4], 64
    $region21: #{tpu_custom_call.1} parent=1 // pred_fallthru
      _
    %40 = sfence
    %v41 = vld [vmem:[#allocation7] sm:$0x7]
    %s42 = sld [smem:[#allocation3]]
    %v43 = vstv %s42
    %v44 = vmul.f32 %v41, %v43
    %s45 = sld [smem:[#allocation3 + $0x1]]
    %v46 = vstv %s45
    %v47 = vmul.f32 %v41, %v46
    %v49 = vrot.slane %v47, 1
    %v51 = vadd.f32 %v44, %v49
    %s52 = sld [smem:[#allocation3 + $0x2]]
    %v53 = vstv %s52
    %v54 = vmul.f32 %v41, %v53
    %v56 = vrot.slane %v54, 2
    %v58 = vadd.f32 %v51, %v56
    %s59 = sld [smem:[#allocation2]]
    %v60 = vstv %s59
    %v61 = vadd.f32 %v58, %v60
    %62 = vst [vmem:[#allocation8] sm:$0x1] %v61
    // Predicated region
    $region22: #{tpu_custom_call.1} parent=1 // pred_check
      _
    $region23: #{tpu_custom_call.1} parent=1 // pred_check_branch
      %64 = sbr.rel (0) target = $region25
    $region24: #{tpu_custom_call.1} parent=1 // pred_region
      %s66 = ssub.s32 16, 16
      %67 = vsyncadd [#allocation5], %s66
      %s69 = sshll.u32 [#allocation8], 4
      %s70 = int_to_ptr.vmem [resolvable:$true] %s69
      %72 = dma.vmem_to_hbm [thread:$0]  %s70, 16, %s3, [#allocation5]
    $region25: #{tpu_custom_call.1} parent=1 // pred_fallthru
      _
    // Predicated region
    $region26: #{tpu_custom_call.1} parent=1 // pred_check
      _
    $region27: #{tpu_custom_call.1} parent=1 // pred_check_branch
      %74 = sbr.rel (0) target = $region29
    $region28: #{tpu_custom_call.1} parent=1 // pred_region
      %75 = dma.done [#allocation5], 16
    $region29: #{tpu_custom_call.1} parent=1 // pred_fallthru
      _
    %76 = vsyncpa [#allocation4], 1
    %77 = vsyncpa [#allocation5], 1
    %78 = vsyncpa [#allocation6], 1

</llo_original>
